<compile_context>
chip_gen: v7x
topology: tpu7x:2x2x1
jax: 0.10.0
libtpu: 0.0.40
codegen_flags: <defaults>
</compile_context>

<pallas_src>
import functools

import jax
import jax.numpy as jnp
from jax.experimental import pallas as pl
from jax.experimental.pallas import tpu as pltpu


def _round_up(a, b):
    return (a + b - 1) // b * b


def _vmem_capacity_bytes():
    """Physical per-core VMEM (v5e/v6e 128 MiB, v7x 64 MiB); conservative fallback."""
    try:
        cap = getattr(pltpu.get_tpu_info(), "vmem_capacity_bytes", None)
        if cap:
            return int(cap)
    except Exception:
        pass
    return 64 * 1024 * 1024


def _pick_tile_l(L, halo, footprint, vmem_budget, max_tile_l=None):
    """Largest lane-dense time tile (multiple of 128, >= halo, halo | tile)
    that (a) fits the VMEM budget and (b) wastes <= 25% of the padded sequence.
    Falls back to the smallest admissible tile."""
    upper = max(_round_up(L, 128), halo)
    if max_tile_l is not None:
        upper = min(upper, max(_round_up(max_tile_l, 128), halo))
    cands = [t for t in (4096, 2048, 1024, 512, 256, 128) if halo <= t <= upper]
    if not cands:
        cands = [halo]                              # huge dilation / tiny L
    fit = [t for t in cands if footprint(t) <= vmem_budget] or [cands[-1]]
    for t in fit:                                   # descending
        l_pad = _round_up(L, t)
        if 4 * (l_pad - L) <= l_pad:                # padding waste <= 25%
            return t
    return fit[-1]


def _temporal_block_kernel(*refs, K, dilation, padding, tile_l, halo,
                           has_downsample):
    """One (batch, time-tile) grid step.

    x_cur  : (C_in, T)        current time tile of x (bf16)
    x_halo : (C_in, H)        last H columns of the previous tile (unused on l==0)
    w_ref  : (K, C_out, C_in) weight-normalized conv1 weight, tap-major (bf16)
    b_ref  : (C_out, 1)       conv1 bias (f32)
    wd_ref : (C_out, C_in)    1x1 downsample weight (bf16)   [only if downsample]
    bd_ref : (C_out, 1)       1x1 downsample bias (f32)      [only if downsample]
    o_ref  : (C_out, T)
    win    : (C_in, H + T)    VMEM scratch: [halo | cur] contiguous time window
    """
    if has_downsample:
        x_cur, x_halo, w_ref, b_ref, wd_ref, bd_ref, o_ref, win = refs
    else:
        x_cur, x_halo, w_ref, b_ref, o_ref, win = refs
        wd_ref = bd_ref = None

    T, H = tile_l, halo
    l = pl.program_id(1)
    c_in = win.shape[0]
    c_out = o_ref.shape[0]

    cur = x_cur[...]                                    # (C_in, T) bf16

    # Stage [halo | current tile] so every dilated tap below is a static lane
    # slice.  Halo is zeros on the first tile (causal left padding).
    # TODO(synk): a single overlapping-window BlockSpec (pl.Element time dim on
    # a front-padded x) would remove this VMEM staging copy entirely.
    @pl.when(l == 0)
    def _():
        win[:, :H] = jnp.zeros((c_in, H), win.dtype)

    @pl.when(l > 0)
    def _():
        win[:, :H] = x_halo[...]

    win[:, H:] = cur

    # Dilated causal conv: out[:, t] = sum_k W_k @ x[:, t - (padding - k*dil)].
    # TODO(synk): fuse the K per-tap dots into one (C_out, K*C_in) contraction
    # once C_in >= 64 and the kernel is MXU-bound; at typical TCN widths it is
    # HBM-bound and per-tap dots are fine.
    acc = jnp.zeros((c_out, T), jnp.float32)
    for k in range(K):
        s = padding - k * dilation                      # causal look-back of tap k
        xk = win[:, H - s:H + T - s]                    # (C_in, T), static lane slice
        acc = acc + jnp.dot(w_ref[k], xk,
                            preferred_element_type=jnp.float32)   # MXU, f32 acc

    out = jnp.maximum(acc + b_ref[...], 0.0)            # bias + ReLU (f32, lane bcast)

    if has_downsample:
        res = jnp.dot(wd_ref[...], cur,
                      preferred_element_type=jnp.float32) + bd_ref[...]
    else:
        # NOTE: identity residual uses the bf16-rounded x (matches the bf16
        # reference below); the exact PyTorch module adds full-precision x.
        res = cur.astype(jnp.float32)

    o_ref[...] = jnp.maximum(out + res, 0.0).astype(o_ref.dtype)


def temporal_block_forward(x, w_v, w_g, b, wd, bd, *,
                           kernel_size, stride, dilation, padding,
                           compute_dtype=jnp.bfloat16, out_dtype=None,
                           max_tile_l=None):
    """x: (N, C_in, L) float32 (PyTorch NCL).  Returns (N, C_out, L) in
    out_dtype (default: x.dtype; pass jnp.bfloat16 to halve output writeback)."""
    # TODO(synk): stride > 1 unsupported — the module's residual add requires
    # the chomped conv output length to equal L, which only holds for stride=1
    # and padding == (kernel_size - 1) * dilation.
    assert stride == 1
    assert padding == (kernel_size - 1) * dilation
    N, C_in, L = x.shape
    C_out = w_v.shape[0]
    out_dtype = x.dtype if out_dtype is None else out_dtype
    has_downsample = wd is not None
    if not has_downsample:
        assert C_in == C_out, "identity residual requires C_in == C_out"

    # weight_norm (PyTorch dim=0): w = g * v / ||v||, norm over (C_in, K) per
    # output channel.  Computed in f32, then rounded to the MXU feed dtype.
    # (All-zero filter rows give NaN, same as PyTorch.)
    v = w_v.astype(jnp.float32)
    v_norm = jnp.sqrt(jnp.sum(v * v, axis=(1, 2), keepdims=True))
    w_eff = w_g.astype(jnp.float32).reshape(C_out, 1, 1) * v / v_norm     # (C_out,C_in,K)
    w_koi = jnp.transpose(w_eff, (2, 0, 1)).astype(compute_dtype)         # (K,C_out,C_in)

    # Causal halo: smallest 128-multiple covering the look-back of tap 0.
    halo = max(128, _round_up(padding, 128))

    in_bytes = jnp.dtype(compute_dtype).itemsize
    out_bytes = jnp.dtype(out_dtype).itemsize

    def footprint(t):
        f = 2 * C_in * t * in_bytes            # double-buffered current-tile block
        f += 2 * C_in * halo * in_bytes        # double-buffered halo block
        f += 2 * C_out * t * out_bytes         # double-buffered output block
        f += C_in * (halo + t) * in_bytes      # [halo | cur] scratch window
        f += 3 * C_out * t * 4                 # f32 acc / temporaries (rough)
        return int(1.3 * f)

    capacity = _vmem_capacity_bytes()
    budget = min(capacity // 3, 40 * 1024 * 1024)
    tile_l = _pick_tile_l(L, halo, footprint, budget, max_tile_l)
    L_pad = _round_up(L, tile_l)
    num_l = L_pad // tile_l
    halo_blocks_per_tile = tile_l // halo

    x_c = x.astype(compute_dtype)
    if L_pad != L:
        # Zero-pad the tail so output stores stay lane-dense; tail is sliced off.
        x_c = jnp.pad(x_c, ((0, 0), (0, 0), (0, L_pad - L)))

    # Current tile + small halo view (last `halo` columns of the previous
    # tile).  On l==0 the halo block is unused (zeroed in-kernel), so clamping
    # its index to 0 is safe.
    x_spec_cur = pl.BlockSpec((None, C_in, tile_l), lambda n, l: (n, 0, l))
    x_spec_halo = pl.BlockSpec(
        (None, C_in, halo),
        lambda n, l: (n, 0, jnp.maximum(l * halo_blocks_per_tile - 1, 0)))
    w_spec = pl.BlockSpec((kernel_size, C_out, C_in), lambda n, l: (0, 0, 0))
    b_spec = pl.BlockSpec((C_out, 1), lambda n, l: (0, 0))

    in_specs = [x_spec_cur, x_spec_halo, w_spec, b_spec]
    args = [x_c, x_c, w_koi, b.astype(jnp.float32).reshape(C_out, 1)]

    if has_downsample:
        in_specs += [pl.BlockSpec((C_out, C_in), lambda n, l: (0, 0)),
                     pl.BlockSpec((C_out, 1), lambda n, l: (0, 0))]
        args += [wd[:, :, 0].astype(compute_dtype),
                 bd.astype(jnp.float32).reshape(C_out, 1)]

    kernel = functools.partial(
        _temporal_block_kernel, K=kernel_size, dilation=dilation,
        padding=padding, tile_l=tile_l, halo=halo,
        has_downsample=has_downsample)

    # Request ~2x the estimated footprint, never the whole physical VMEM.
    vmem_limit = int(min(max(2 * footprint(tile_l), 32 * 1024 * 1024),
                         int(0.75 * capacity)))

    out = pl.pallas_call(
        kernel,
        out_shape=jax.ShapeDtypeStruct((N, C_out, L_pad), out_dtype),
        grid_spec=pltpu.PrefetchScalarGridSpec(
            num_scalar_prefetch=0,
            grid=(N, num_l),
            in_specs=in_specs,
            out_specs=pl.BlockSpec((None, C_out, tile_l), lambda n, l: (n, 0, l)),
            scratch_shapes=[pltpu.VMEM((C_in, halo + tile_l), compute_dtype)],
        ),
        compiler_params=pltpu.CompilerParams(
            dimension_semantics=("parallel", "parallel"),
            vmem_limit_bytes=vmem_limit),
    )(*args)

    return out if L_pad == L else out[:, :, :L]


def _reference_forward(x, w_v, w_g, b, wd, bd, *, dilation, padding,
                       compute_dtype=jnp.float32):
    """Pure-JAX reference (lax.conv) mirroring the PyTorch module.  Operands
    are rounded to `compute_dtype` (and back to f32) so it matches a kernel
    that feeds the MXU in that dtype with f32 accumulation."""
    C_out = w_v.shape[0]
    v = w_v.astype(jnp.float32)
    v_norm = jnp.sqrt(jnp.sum(v * v, axis=(1, 2), keepdims=True))
    w_eff = w_g.astype(jnp.float32).reshape(C_out, 1, 1) * v / v_norm
    w_eff = w_eff.astype(compute_dtype).astype(jnp.float32)
    xr = x.astype(compute_dtype).astype(jnp.float32)
    out = jax.lax.conv_general_dilated(
        xr, w_eff, window_strides=(1,), padding=[(padding, padding)],
        rhs_dilation=(dilation,), dimension_numbers=("NCH", "OIH", "NCH"),
        precision=jax.lax.Precision.HIGHEST)
    out = out + b[None, :, None]
    if padding > 0:
        out = out[:, :, :-padding]                                       # Chomp1d
    out = jnp.maximum(out, 0.0)
    if wd is not None:
        wdr = wd.astype(compute_dtype).astype(jnp.float32)
        res = jax.lax.conv_general_dilated(
            xr, wdr, window_strides=(1,), padding=[(0, 0)],
            dimension_numbers=("NCH", "OIH", "NCH"),
            precision=jax.lax.Precision.HIGHEST) + bd[None, :, None]
    else:
        res = xr
    return jnp.maximum(out + res, 0.0)


if __name__ == "__main__":
    key = jax.random.PRNGKey(0)

    def run_case(N, C_in, C_out, L, K, dilation, with_downsample, case_key,
                 max_tile_l=None, out_dtype=None, atol=2e-3, rtol=2e-3):
        stride = 1
        padding = (K - 1) * dilation
        ks = jax.random.split(case_key, 6)
        x = jax.random.normal(ks[0], (N, C_in, L), jnp.float32)
        w_v = 0.01 * jax.random.normal(ks[1], (C_out, C_in, K), jnp.float32)
        w_g = 0.5 + jax.random.uniform(ks[2], (C_out,), jnp.float32)
        b = 0.1 * jax.random.normal(ks[3], (C_out,), jnp.float32)
        if with_downsample:
            wd = 0.01 * jax.random.normal(ks[4], (C_out, C_in, 1), jnp.float32)
            bd = 0.1 * jax.random.normal(ks[5], (C_out,), jnp.float32)
        else:
            wd = bd = None
        y = temporal_block_forward(x, w_v, w_g, b, wd, bd,
                                   kernel_size=K, stride=stride,
                                   dilation=dilation, padding=padding,
                                   max_tile_l=max_tile_l, out_dtype=out_dtype)
        jax.block_until_ready(y)
        y_ref = _reference_forward(x, w_v, w_g, b, wd, bd,
                                   dilation=dilation, padding=padding,
                                   compute_dtype=jnp.bfloat16)
        return bool(jnp.allclose(y.astype(jnp.float32), y_ref,
                                 atol=atol, rtol=rtol))

    k1, k2, k3, k4 = jax.random.split(key, 4)
    ok = True
    # Case 1: C_in != C_out -> 1x1 downsample residual (L=16 padded to one 128 tile).
    ok &= run_case(2, 4, 8, 16, 3, 2, True, k1)
    # Case 2: C_in == C_out -> identity residual.
    ok &= run_case(2, 8, 8, 16, 3, 2, False, k2)
    # Case 3: multi-tile time axis (tile_l capped at 256 -> 4 tiles), exercises the halo.
    ok &= run_case(2, 4, 8, 1024, 3, 2, True, k3, max_tile_l=256)
    # Case 4: bf16 output path (halved writeback), looser tolerance for the output cast.
    ok &= run_case(2, 8, 8, 512, 3, 4, False, k4, out_dtype=jnp.bfloat16,
                   atol=3e-2, rtol=3e-2)

    print("KERNEL_OK" if ok else "MISMATCH")
</pallas_src>

<mosaic_0001>
module attributes {stable_mosaic.version = 11 : i64} {
  func.func @_temporal_block_kernel(%arg0: i32, %arg1: i32, %arg2: memref<1x4x128xbf16, #tpu.memory_space<vmem>>, %arg3: memref<1x4x128xbf16, #tpu.memory_space<vmem>>, %arg4: memref<3x8x4xbf16, #tpu.memory_space<vmem>>, %arg5: memref<8x1xf32, #tpu.memory_space<vmem>>, %arg6: memref<8x4xbf16, #tpu.memory_space<vmem>>, %arg7: memref<8x1xf32, #tpu.memory_space<vmem>>, %arg8: memref<1x8x128xf32, #tpu.memory_space<vmem>>, %arg9: memref<4x256xbf16, #tpu.memory_space<vmem>>) attributes {dimension_semantics = [#tpu.dimension_semantics<parallel>, #tpu.dimension_semantics<parallel>], iteration_bounds = array<i64: 2, 1>, scalar_prefetch = 0 : i64, scratch_operands = 1 : i64, tpu.core_type = #tpu.core_type<tc>, window_params = [{transform_indices = @transform_0, window_bounds = array<i64: 1, 4, 128>}, {transform_indices = @transform_1, window_bounds = array<i64: 1, 4, 128>}, {pipeline_mode = #tpu.pipeline_mode<synchronous>, transform_indices = @transform_2, window_bounds = array<i64: 3, 8, 4>}, {pipeline_mode = #tpu.pipeline_mode<synchronous>, transform_indices = @transform_3, window_bounds = array<i64: 8, 1>}, {pipeline_mode = #tpu.pipeline_mode<synchronous>, transform_indices = @transform_4, window_bounds = array<i64: 8, 4>}, {pipeline_mode = #tpu.pipeline_mode<synchronous>, transform_indices = @transform_5, window_bounds = array<i64: 8, 1>}, {transform_indices = @transform_6, window_bounds = array<i64: 1, 8, 128>}]} {
    %c0 = arith.constant 0 : index
    %c0_0 = arith.constant 0 : index
    %c0_1 = arith.constant 0 : index
    %0 = vector.load %arg2[%c0, %c0_0, %c0_1] : memref<1x4x128xbf16, #tpu.memory_space<vmem>>, vector<1x4x128xbf16>
    %1 = vector.shape_cast %0 : vector<1x4x128xbf16> to vector<4x128xbf16>
    %c0_i32 = arith.constant 0 : i32
    %2 = arith.cmpi eq, %arg1, %c0_i32 : i32
    %3 = arith.extui %2 : i1 to i32
    %c0_i32_2 = arith.constant 0 : i32
    %4 = arith.cmpi ne, %3, %c0_i32_2 : i32
    scf.if %4 {
      %cst_32 = arith.constant 0.000000e+00 : bf16
      %41 = vector.broadcast %cst_32 : bf16 to vector<4x128xbf16>
      %c0_33 = arith.constant 0 : index
      %c0_34 = arith.constant 0 : index
      %42 = vector.load %arg9[%c0_33, %c0_34] : memref<4x256xbf16, #tpu.memory_space<vmem>>, vector<4x128xbf16>
      tpu.vector_store %arg9[%c0_33, %c0_34], %41 {strides = array<i32>} : memref<4x256xbf16, #tpu.memory_space<vmem>>, vector<4x128xbf16>,
    } else {
    }
    %c0_i32_3 = arith.constant 0 : i32
    %5 = arith.cmpi sgt, %arg1, %c0_i32_3 : i32
    %6 = arith.extui %5 : i1 to i32
    %c0_i32_4 = arith.constant 0 : i32
    %7 = arith.cmpi ne, %6, %c0_i32_4 : i32
    scf.if %7 {
      %c0_32 = arith.constant 0 : index
      %c0_33 = arith.constant 0 : index
      %c0_34 = arith.constant 0 : index
      %41 = vector.load %arg3[%c0_32, %c0_33, %c0_34] : memref<1x4x128xbf16, #tpu.memory_space<vmem>>, vector<1x4x128xbf16>
      %42 = vector.shape_cast %41 : vector<1x4x128xbf16> to vector<4x128xbf16>
      %c0_35 = arith.constant 0 : index
      %c0_36 = arith.constant 0 : index
      %43 = vector.load %arg9[%c0_35, %c0_36] : memref<4x256xbf16, #tpu.memory_space<vmem>>, vector<4x128xbf16>
      tpu.vector_store %arg9[%c0_35, %c0_36], %42 {strides = array<i32>} : memref<4x256xbf16, #tpu.memory_space<vmem>>, vector<4x128xbf16>,
    } else {
    }
    %c0_5 = arith.constant 0 : index
    %c128 = arith.constant 128 : index
    %8 = vector.load %arg9[%c0_5, %c128] : memref<4x256xbf16, #tpu.memory_space<vmem>>, vector<4x128xbf16>
    tpu.vector_store %arg9[%c0_5, %c128], %1 {strides = array<i32>} : memref<4x256xbf16, #tpu.memory_space<vmem>>, vector<4x128xbf16>,
    %cst = arith.constant 0.000000e+00 : f32
    %9 = vector.broadcast %cst : f32 to vector<8x128xf32>
    %c0_6 = arith.constant 0 : index
    %c124 = arith.constant 124 : index
    %10 = vector.load %arg9[%c0_6, %c124] : memref<4x256xbf16, #tpu.memory_space<vmem>>, vector<4x128xbf16>
    %c0_7 = arith.constant 0 : index
    %c0_8 = arith.constant 0 : index
    %c0_9 = arith.constant 0 : index
    %11 = vector.load %arg4[%c0_7, %c0_8, %c0_9] : memref<3x8x4xbf16, #tpu.memory_space<vmem>>, vector<1x8x4xbf16>
    %12 = vector.shape_cast %11 : vector<1x8x4xbf16> to vector<8x4xbf16>
    %cst_10 = arith.constant dense<0.000000e+00> : vector<8x128xf32>
    %13 = tpu.matmul %12, %10, %cst_10 {dimension_numbers = #tpu.dot_dimension_numbers<[1], [0], [0], [1], [0, 0, 1, 1], [], []>} : vector<8x4xbf16>, vector<4x128xbf16>, vector<8x128xf32> -> vector<8x128xf32>
    %14 = arith.addf %9, %13 : vector<8x128xf32>
    %c0_11 = arith.constant 0 : index
    %c126 = arith.constant 126 : index
    %15 = vector.load %arg9[%c0_11, %c126] : memref<4x256xbf16, #tpu.memory_space<vmem>>, vector<4x128xbf16>
    %c1 = arith.constant 1 : index
    %c0_12 = arith.constant 0 : index
    %c0_13 = arith.constant 0 : index
    %16 = vector.load %arg4[%c1, %c0_12, %c0_13] : memref<3x8x4xbf16, #tpu.memory_space<vmem>>, vector<1x8x4xbf16>
    %17 = vector.shape_cast %16 : vector<1x8x4xbf16> to vector<8x4xbf16>
    %cst_14 = arith.constant dense<0.000000e+00> : vector<8x128xf32>
    %18 = tpu.matmul %17, %15, %cst_14 {dimension_numbers = #tpu.dot_dimension_numbers<[1], [0], [0], [1], [0, 0, 1, 1], [], []>} : vector<8x4xbf16>, vector<4x128xbf16>, vector<8x128xf32> -> vector<8x128xf32>
    %19 = arith.addf %14, %18 : vector<8x128xf32>
    %c0_15 = arith.constant 0 : index
    %c128_16 = arith.constant 128 : index
    %20 = vector.load %arg9[%c0_15, %c128_16] : memref<4x256xbf16, #tpu.memory_space<vmem>>, vector<4x128xbf16>
    %c2 = arith.constant 2 : index
    %c0_17 = arith.constant 0 : index
    %c0_18 = arith.constant 0 : index
    %21 = vector.load %arg4[%c2, %c0_17, %c0_18] : memref<3x8x4xbf16, #tpu.memory_space<vmem>>, vector<1x8x4xbf16>
    %22 = vector.shape_cast %21 : vector<1x8x4xbf16> to vector<8x4xbf16>
    %cst_19 = arith.constant dense<0.000000e+00> : vector<8x128xf32>
    %23 = tpu.matmul %22, %20, %cst_19 {dimension_numbers = #tpu.dot_dimension_numbers<[1], [0], [0], [1], [0, 0, 1, 1], [], []>} : vector<8x4xbf16>, vector<4x128xbf16>, vector<8x128xf32> -> vector<8x128xf32>
    %24 = arith.addf %19, %23 : vector<8x128xf32>
    %c0_20 = arith.constant 0 : index
    %c0_21 = arith.constant 0 : index
    %25 = vector.load %arg5[%c0_20, %c0_21] : memref<8x1xf32, #tpu.memory_space<vmem>>, vector<8x1xf32>
    %26 = vector.broadcast %25 : vector<8x1xf32> to vector<8x128xf32>
    %27 = arith.addf %24, %26 : vector<8x128xf32>
    %cst_22 = arith.constant 0.000000e+00 : f32
    %28 = vector.broadcast %cst_22 : f32 to vector<8x128xf32>
    %29 = arith.maximumf %27, %28 : vector<8x128xf32>
    %c0_23 = arith.constant 0 : index
    %c0_24 = arith.constant 0 : index
    %30 = vector.load %arg6[%c0_23, %c0_24] : memref<8x4xbf16, #tpu.memory_space<vmem>>, vector<8x4xbf16>
    %cst_25 = arith.constant dense<0.000000e+00> : vector<8x128xf32>
    %31 = tpu.matmul %30, %1, %cst_25 {dimension_numbers = #tpu.dot_dimension_numbers<[1], [0], [0], [1], [0, 0, 1, 1], [], []>} : vector<8x4xbf16>, vector<4x128xbf16>, vector<8x128xf32> -> vector<8x128xf32>
    %c0_26 = arith.constant 0 : index
    %c0_27 = arith.constant 0 : index
    %32 = vector.load %arg7[%c0_26, %c0_27] : memref<8x1xf32, #tpu.memory_space<vmem>>, vector<8x1xf32>
    %33 = vector.broadcast %32 : vector<8x1xf32> to vector<8x128xf32>
    %34 = arith.addf %31, %33 : vector<8x128xf32>
    %35 = arith.addf %29, %34 : vector<8x128xf32>
    %cst_28 = arith.constant 0.000000e+00 : f32
    %36 = vector.broadcast %cst_28 : f32 to vector<8x128xf32>
    %37 = arith.maximumf %35, %36 : vector<8x128xf32>
    %c0_29 = arith.constant 0 : index
    %c0_30 = arith.constant 0 : index
    %c0_31 = arith.constant 0 : index
    %38 = vector.load %arg8[%c0_29, %c0_30, %c0_31] : memref<1x8x128xf32, #tpu.memory_space<vmem>>, vector<1x8x128xf32>
    %39 = vector.shape_cast %38 : vector<1x8x128xf32> to vector<8x128xf32>
    %40 = vector.shape_cast %37 : vector<8x128xf32> to vector<1x8x128xf32>
    tpu.vector_store %arg8[%c0_29, %c0_30, %c0_31], %40 {strides = array<i32>} : memref<1x8x128xf32, #tpu.memory_space<vmem>>, vector<1x8x128xf32>,
    return
  }
  func.func @transform_0(%arg0: i32, %arg1: i32) -> (i32, i32, i32) {
    %c0_i32 = arith.constant 0 : i32
    %c0_i32_0 = arith.constant 0 : i32
    return %arg0, %c0_i32, %arg1 : i32, i32, i32
  }
  func.func @transform_1(%arg0: i32, %arg1: i32) -> (i32, i32, i32) {
    %c1_i32 = arith.constant 1 : i32
    %0 = arith.muli %arg1, %c1_i32 : i32
    %c1_i32_0 = arith.constant 1 : i32
    %1 = arith.subi %0, %c1_i32_0 : i32
    %c0_i32 = arith.constant 0 : i32
    %2 = arith.maxsi %1, %c0_i32 : i32
    %c0_i32_1 = arith.constant 0 : i32
    %c0_i32_2 = arith.constant 0 : i32
    return %arg0, %c0_i32_1, %2 : i32, i32, i32
  }
  func.func @transform_2(%arg0: i32, %arg1: i32) -> (i32, i32, i32) {
    %c0_i32 = arith.constant 0 : i32
    %c0_i32_0 = arith.constant 0 : i32
    %c0_i32_1 = arith.constant 0 : i32
    %c0_i32_2 = arith.constant 0 : i32
    return %c0_i32, %c0_i32_0, %c0_i32_1 : i32, i32, i32
  }
  func.func @transform_3(%arg0: i32, %arg1: i32) -> (i32, i32) {
    %c0_i32 = arith.constant 0 : i32
    %c0_i32_0 = arith.constant 0 : i32
    %c0_i32_1 = arith.constant 0 : i32
    return %c0_i32, %c0_i32_0 : i32, i32
  }
  func.func @transform_4(%arg0: i32, %arg1: i32) -> (i32, i32) {
    %c0_i32 = arith.constant 0 : i32
    %c0_i32_0 = arith.constant 0 : i32
    %c0_i32_1 = arith.constant 0 : i32
    return %c0_i32, %c0_i32_0 : i32, i32
  }
  func.func @transform_5(%arg0: i32, %arg1: i32) -> (i32, i32) {
    %c0_i32 = arith.constant 0 : i32
    %c0_i32_0 = arith.constant 0 : i32
    %c0_i32_1 = arith.constant 0 : i32
    return %c0_i32, %c0_i32_0 : i32, i32
  }
  func.func @transform_6(%arg0: i32, %arg1: i32) -> (i32, i32, i32) {
    %c0_i32 = arith.constant 0 : i32
    %c0_i32_0 = arith.constant 0 : i32
    return %arg0, %c0_i32, %arg1 : i32, i32, i32
  }
}

</mosaic_0001>

<llo_original>
// kernel: tpu_custom_call.1
$region0: #{tpu_custom_call.1}
  #allocation0 [shape = 'u32[]', space=smem, size = 0x4, offset = 0x4, fixed_abs, tag = 'smem constant byte address 0x4 - core index']
  #allocation1 [shape = 'u32[144,128]{1,0:T(1,128)}', space=vmem, size = 0x12000, scoped, tag = 'internal scratch']
  #allocation2 [shape = 'bf16[4,256]{1,0:T(4,128)(2,1)}', space=vmem, size = 0x800, scoped, tag = 'scratch operand']
  %s0 = inlined_call_operand.vmem [shape: bf16[2,4,128], index: 0, kind: input, shape index: {}]
  %s1 = inlined_call_operand.vmem [shape: bf16[2,4,128], index: 1, kind: input, shape index: {}]
  %s2 = inlined_call_operand.vmem [shape: bf16[3,8,4], index: 2, kind: input, shape index: {}]
  %s3 = inlined_call_operand.vmem [shape: f32[8,1], index: 3, kind: input, shape index: {}]
  %s4 = inlined_call_operand.vmem [shape: bf16[8,4], index: 4, kind: input, shape index: {}]
  %s5 = inlined_call_operand.vmem [shape: f32[8,1], index: 5, kind: input, shape index: {}]
  %s6 = inlined_call_operand.hbm [shape: f32[2,8,128], index: 6, kind: output, shape index: {}]
  %s7 = sld [smem:[#allocation0]]
  $region65: #{tpu_custom_call.1} parent=0
    _
  %s9 = ssub.s32 1, %s7
  %s10 = scalar_select 0, %s9, %s7
  $region1: #{tpu_custom_call.1} parent=0
    #allocation3 [shape = 'u8[8192]{0}', space=vmem, size = 0x2000, scoped, tag = 'output window, operand 0']
    #allocation4 [shape = 's32[2]{0}', space=sflag, size = 0x8, scoped, tag = 'scoped memory for tpu_custom_call.1']
    %11 = vsyncpa [#allocation4], 0
    %s12 = scalar_lea.sflag [#allocation4], 1
    %13 = vsyncpa %s12, 0
    loop: start=0, step=1, limit=4
    $region2: #{tpu_custom_call.1} parent=1 // loop_pre_header
      _
    $region3: #{tpu_custom_call.1} parent=1 // loop_header
      %s15 = sphi 0, %s19
      %p16 = scmp.ge.s32.totalorder %s15, 4
      %s22 = sphi 0, %s34
      %s23 = sphi 0, %s30
      %s24 = sphi 0, %s22
      %s25 = sphi 0, %s23
      %s26 = sphi 0, %s24
      %s27 = sphi 0, %s25
      %s39 = sphi 0, %s41
      %s42 = sphi 0, %s39
      %s43 = sphi 0, %s42
      %s59 = sphi 0, %s43
      %s73 = sphi 0, %s75
      %s76 = sphi 0, %s73
      %s77 = sphi 0, %s76
      %s93 = sphi 0, %s77
      %s97 = sphi 0, %s97
      %s99 = sphi 0, %s97
      %s100 = sphi 0, %s99
      %s114 = sphi 0, %s100
      %s118 = sphi 0, %s118
      %s120 = sphi 0, %s118
      %s121 = sphi 0, %s120
      %s135 = sphi 0, %s121
      %s139 = sphi 0, %s139
      %s141 = sphi 0, %s139
      %s142 = sphi 0, %s141
      %s156 = sphi 0, %s142
      %s160 = sphi 0, %s160
      %s162 = sphi 0, %s160
      %s163 = sphi 0, %s162
      %s177 = sphi 0, %s163
      %s185 = sphi 0, %s187
      %s188 = sphi 0, %s185
      %s189 = sphi 0, %s188
      %s205 = sphi 0, %s189
    $region4: #{tpu_custom_call.1} parent=1 // loop_header_branch
      %18 = sbr.rel (%p16) target = $region8
    $region5: #{tpu_custom_call.1} parent=1 // loop_body
      %s20 = ssub.s32 %s15, 1
      %s21 = ssub.s32 %s15, 2
      %s28 = sadd.s32 1, %s23
      %p29 = scmp.ge.s32.totalorder %s28, 1
      %s30 = scalar_select %p29, 0, %s28
      %s31 = sadd.s32 1, %s22
      %s32 = scalar_select %p29, %s31, %s22
      %p33 = scmp.ge.s32.totalorder %s32, 2
      %s34 = scalar_select %p33, 0, %s32
      %s35 = ssub.s32 %s22, %s34
      %s36 = ssub.s32 %s23, %s30
      %s37 = sor.u32 %s35, %s36
      %p38 = scmp.eq.s32.totalorder %s37, 0
      %s40 = sadd.s32 %s39, 1
      %s41 = scalar_select %p38, %s39, %s40
      %p44 = pneg %p38
      %p45 = scmp.eq.s32.totalorder %s15, 1
      %p46 = por %p44, %p45
      %p47 = scmp.ne.s32.totalorder %s39, %s42
      %p48 = scmp.eq.s32.totalorder %s15, 0
      %p49 = por %p47, %p48
      %p50 = scmp.ne.s32.totalorder %s39, %s42
      %p51 = scmp.eq.s32.totalorder %s20, 1
      %p52 = por %p50, %p51
      %p53 = scmp.ne.s32.totalorder %s42, %s43
      %p54 = scmp.eq.s32.totalorder %s20, 0
      %p55 = por %p53, %p54
      %p56 = scmp.ne.s32.totalorder %s42, %s43
      %p57 = scmp.eq.s32.totalorder %s21, 1
      %p58 = por %p56, %p57
      %p60 = scmp.ne.s32.totalorder %s43, %s59
      %p61 = scmp.eq.s32.totalorder %s21, 0
      %p62 = por %p60, %p61
      %s63 = ssub.s32 %s23, 1
      %p64 = scmp.gt.s32.totalorder %s63, 0
      %s65 = scalar_select %p64, %s63, 0
      %s66 = ssub.s32 %s30, 1
      %p67 = scmp.gt.s32.totalorder %s66, 0
      %s68 = scalar_select %p67, %s66, 0
      %s69 = ssub.s32 %s22, %s34
      %s70 = ssub.s32 %s65, %s68
      %s71 = sor.u32 %s69, %s70
      %p72 = scmp.eq.s32.totalorder %s71, 0
      %s74 = sadd.s32 %s73, 1
      %s75 = scalar_select %p72, %s73, %s74
      %p78 = pneg %p72
      %p79 = scmp.eq.s32.totalorder %s15, 1
      %p80 = por %p78, %p79
      %p81 = scmp.ne.s32.totalorder %s73, %s76
      %p82 = scmp.eq.s32.totalorder %s15, 0
      %p83 = por %p81, %p82
      %p84 = scmp.ne.s32.totalorder %s73, %s76
      %p85 = scmp.eq.s32.totalorder %s20, 1
      %p86 = por %p84, %p85
      %p87 = scmp.ne.s32.totalorder %s76, %s77
      %p88 = scmp.eq.s32.totalorder %s20, 0
      %p89 = por %p87, %p88
      %p90 = scmp.ne.s32.totalorder %s76, %s77
      %p91 = scmp.eq.s32.totalorder %s21, 1
      %p92 = por %p90, %p91
      %p94 = scmp.ne.s32.totalorder %s77, %s93
      %p95 = scmp.eq.s32.totalorder %s21, 0
      %p96 = por %p94, %p95
      %s98 = sadd.s32 %s97, 1
      %p101 = scmp.eq.s32.totalorder %s15, 1
      %p102 = scmp.ne.s32.totalorder %s97, %s99
      %p103 = scmp.eq.s32.totalorder %s15, 0
      %p104 = por %p102, %p103
      %p105 = scmp.ne.s32.totalorder %s97, %s99
      %p106 = scmp.eq.s32.totalorder %s20, 1
      %p107 = por %p105, %p106
      %p108 = scmp.ne.s32.totalorder %s99, %s100
      %p109 = scmp.eq.s32.totalorder %s20, 0
      %p110 = por %p108, %p109
      %p111 = scmp.ne.s32.totalorder %s99, %s100
      %p112 = scmp.eq.s32.totalorder %s21, 1
      %p113 = por %p111, %p112
      %p115 = scmp.ne.s32.totalorder %s100, %s114
      %p116 = scmp.eq.s32.totalorder %s21, 0
      %p117 = por %p115, %p116
      %s119 = sadd.s32 %s118, 1
      %p122 = scmp.eq.s32.totalorder %s15, 1
      %p123 = scmp.ne.s32.totalorder %s118, %s120
      %p124 = scmp.eq.s32.totalorder %s15, 0
      %p125 = por %p123, %p124
      %p126 = scmp.ne.s32.totalorder %s118, %s120
      %p127 = scmp.eq.s32.totalorder %s20, 1
      %p128 = por %p126, %p127
      %p129 = scmp.ne.s32.totalorder %s120, %s121
      %p130 = scmp.eq.s32.totalorder %s20, 0
      %p131 = por %p129, %p130
      %p132 = scmp.ne.s32.totalorder %s120, %s121
      %p133 = scmp.eq.s32.totalorder %s21, 1
      %p134 = por %p132, %p133
      %p136 = scmp.ne.s32.totalorder %s121, %s135
      %p137 = scmp.eq.s32.totalorder %s21, 0
      %p138 = por %p136, %p137
      %s140 = sadd.s32 %s139, 1
      %p143 = scmp.eq.s32.totalorder %s15, 1
      %p144 = scmp.ne.s32.totalorder %s139, %s141
      %p145 = scmp.eq.s32.totalorder %s15, 0
      %p146 = por %p144, %p145
      %p147 = scmp.ne.s32.totalorder %s139, %s141
      %p148 = scmp.eq.s32.totalorder %s20, 1
      %p149 = por %p147, %p148
      %p150 = scmp.ne.s32.totalorder %s141, %s142
      %p151 = scmp.eq.s32.totalorder %s20, 0
      %p152 = por %p150, %p151
      %p153 = scmp.ne.s32.totalorder %s141, %s142
      %p154 = scmp.eq.s32.totalorder %s21, 1
      %p155 = por %p153, %p154
      %p157 = scmp.ne.s32.totalorder %s142, %s156
      %p158 = scmp.eq.s32.totalorder %s21, 0
      %p159 = por %p157, %p158
      %s161 = sadd.s32 %s160, 1
      %p164 = scmp.eq.s32.totalorder %s15, 1
      %p165 = scmp.ne.s32.totalorder %s160, %s162
      %p166 = scmp.eq.s32.totalorder %s15, 0
      %p167 = por %p165, %p166
      %p168 = scmp.ne.s32.totalorder %s160, %s162
      %p169 = scmp.eq.s32.totalorder %s20, 1
      %p170 = por %p168, %p169
      %p171 = scmp.ne.s32.totalorder %s162, %s163
      %p172 = scmp.eq.s32.totalorder %s20, 0
      %p173 = por %p171, %p172
      %p174 = scmp.ne.s32.totalorder %s162, %s163
      %p175 = scmp.eq.s32.totalorder %s21, 1
      %p176 = por %p174, %p175
      %p178 = scmp.ne.s32.totalorder %s163, %s177
      %p179 = scmp.eq.s32.totalorder %s21, 0
      %p180 = por %p178, %p179
      %s181 = ssub.s32 %s22, %s34
      %s182 = ssub.s32 %s23, %s30
      %s183 = sor.u32 %s181, %s182
      %p184 = scmp.eq.s32.totalorder %s183, 0
      %s186 = sadd.s32 %s185, 1
      %s187 = scalar_select %p184, %s185, %s186
      %p190 = pneg %p184
      %p191 = scmp.eq.s32.totalorder %s15, 1
      %p192 = por %p190, %p191
      %p193 = scmp.ne.s32.totalorder %s185, %s188
      %p194 = scmp.eq.s32.totalorder %s15, 0
      %p195 = por %p193, %p194
      %p196 = scmp.ne.s32.totalorder %s185, %s188
      %p197 = scmp.eq.s32.totalorder %s20, 1
      %p198 = por %p196, %p197
      %p199 = scmp.ne.s32.totalorder %s188, %s189
      %p200 = scmp.eq.s32.totalorder %s20, 0
      %p201 = por %p199, %p200
      %p202 = scmp.ne.s32.totalorder %s188, %s189
      %p203 = scmp.eq.s32.totalorder %s21, 1
      %p204 = por %p202, %p203
      %p206 = scmp.ne.s32.totalorder %s189, %s205
      %p207 = scmp.eq.s32.totalorder %s21, 0
      %p208 = por %p206, %p207
      %p209 = scmp.le.s32.totalorder 1, %s15
      %p210 = scmp.lt.s32.totalorder %s15, 3
      %p211 = pnand %p209, %p210
      %p212 = pneg %p211
      // Predicated region
      $region9: #{tpu_custom_call.1} parent=5 // pred_check
        _
      $region10: #{tpu_custom_call.1} parent=5 // pred_check_branch
        %214 = sbr.rel (%p211) target = $region12
      $region11: #{tpu_custom_call.1} parent=5 // pred_region
        %s215 = ssub.s32 %s15, 1
        // Predicated region
        $region13: #{tpu_custom_call.1} parent=11 // pred_check
          %p216 = pneg %p110
        $region14: #{tpu_custom_call.1} parent=11 // pred_check_branch
          %218 = sbr.rel (%p216) target = $region16
        $region15: #{tpu_custom_call.1} parent=11 // pred_region
          _
        $region16: #{tpu_custom_call.1} parent=11 // pred_fallthru
          _
        // Predicated region
        $region17: #{tpu_custom_call.1} parent=11 // pred_check
          %p219 = pneg %p131
        $region18: #{tpu_custom_call.1} parent=11 // pred_check_branch
          %221 = sbr.rel (%p219) target = $region20
        $region19: #{tpu_custom_call.1} parent=11 // pred_region
          _
        $region20: #{tpu_custom_call.1} parent=11 // pred_fallthru
          _
        // Predicated region
        $region21: #{tpu_custom_call.1} parent=11 // pred_check
          %p222 = pneg %p152
        $region22: #{tpu_custom_call.1} parent=11 // pred_check_branch
          %224 = sbr.rel (%p222) target = $region24
        $region23: #{tpu_custom_call.1} parent=11 // pred_region
          _
        $region24: #{tpu_custom_call.1} parent=11 // pred_fallthru
          _
        // Predicated region
        $region25: #{tpu_custom_call.1} parent=11 // pred_check
          %p225 = pneg %p173
        $region26: #{tpu_custom_call.1} parent=11 // pred_check_branch
          %227 = sbr.rel (%p225) target = $region28
        $region27: #{tpu_custom_call.1} parent=11 // pred_region
          _
        $region28: #{tpu_custom_call.1} parent=11 // pred_fallthru
          _
      $region12: #{tpu_custom_call.1} parent=5 // pred_fallthru
        _
      %p228 = scmp.lt.s32.totalorder %s15, 2
      // Predicated region
      $region29: #{tpu_custom_call.1} parent=5 // pred_check
        %p229 = pneg %p228
      $region30: #{tpu_custom_call.1} parent=5 // pred_check_branch
        %231 = sbr.rel (%p229) target = $region32
      $region31: #{tpu_custom_call.1} parent=5 // pred_region
        // Predicated region
        $region33: #{tpu_custom_call.1} parent=31 // pred_check
          %p232 = pneg %p49
        $region34: #{tpu_custom_call.1} parent=31 // pred_check_branch
          %234 = sbr.rel (%p232) target = $region36
        $region35: #{tpu_custom_call.1} parent=31 // pred_region
          %p235 = scmp.lt.s32.totalorder %s22, 1
          %s236 = scalar_select %p235, %s22, 1
          %p237 = scmp.lt.s32.totalorder %s23, 0
          %s238 = scalar_select %p237, %s23, 0
          %s239 = sadd.s32 %s238, %s236
          %s240 = smul.addr %s239, 2
          %s241 = scalar_lea.vmem %s0, %s240
        $region36: #{tpu_custom_call.1} parent=31 // pred_fallthru
          _
        // Predicated region
        $region37: #{tpu_custom_call.1} parent=31 // pred_check
          %p242 = pneg %p83
        $region38: #{tpu_custom_call.1} parent=31 // pred_check_branch
          %244 = sbr.rel (%p242) target = $region40
        $region39: #{tpu_custom_call.1} parent=31 // pred_region
          %s245 = ssub.s32 %s23, 1
          %p246 = scmp.gt.s32.totalorder %s245, 0
          %s247 = scalar_select %p246, %s245, 0
          %p248 = scmp.lt.s32.totalorder %s22, 1
          %s249 = scalar_select %p248, %s22, 1
          %p250 = scmp.lt.s32.totalorder %s247, 0
          %s251 = scalar_select %p250, %s247, 0
          %s252 = sadd.s32 %s251, %s249
          %s253 = smul.addr %s252, 2
          %s254 = scalar_lea.vmem %s1, %s253
          %s255 = ssub.s32 %s23, 1
          %p256 = scmp.gt.s32.totalorder %s255, 0
          %s257 = scalar_select %p256, %s255, 0
        $region40: #{tpu_custom_call.1} parent=31 // pred_fallthru
          _
      $region32: #{tpu_custom_call.1} parent=5 // pred_fallthru
        _
      %p258 = scmp.le.s32.totalorder 1, %s15
      %p259 = scmp.lt.s32.totalorder %s15, 3
      %p260 = pnand %p258, %p259
      %p261 = pneg %p260
      // Predicated region
      $region41: #{tpu_custom_call.1} parent=5 // pred_check
        _
      $region42: #{tpu_custom_call.1} parent=5 // pred_check_branch
        %263 = sbr.rel (%p260) target = $region44
      $region43: #{tpu_custom_call.1} parent=5 // pred_region
        %s264 = ssub.s32 %s15, 1
        %p265 = scmp.lt.s32.totalorder %s24, 1
        %s266 = scalar_select %p265, %s24, 1
        %p267 = scmp.lt.s32.totalorder %s25, 0
        %s268 = scalar_select %p267, %s25, 0
        %s269 = sadd.s32 %s268, %s266
        %s270 = smul.addr %s269, 2
        %s271 = scalar_lea.vmem %s0, %s270
        %p272 = pneg %p55
        %p273 = pneg %p52
        %s274 = ssub.s32 %s25, 1
        %p275 = scmp.gt.s32.totalorder %s274, 0
        %s276 = scalar_select %p275, %s274, 0
        %p277 = scmp.lt.s32.totalorder %s24, 1
        %s278 = scalar_select %p277, %s24, 1
        %p279 = scmp.lt.s32.totalorder %s276, 0
        %s280 = scalar_select %p279, %s276, 0
        %s281 = sadd.s32 %s280, %s278
        %s282 = smul.addr %s281, 2
        %s283 = scalar_lea.vmem %s1, %s282
        %p284 = pneg %p89
        %p285 = pneg %p86
        %p286 = pneg %p110
        %p287 = pneg %p107
        %p288 = pneg %p131
        %p289 = pneg %p128
        %p290 = pneg %p152
        %p291 = pneg %p149
        %p292 = pneg %p173
        %p293 = pneg %p170
        %p294 = pneg %p201
        %p295 = pneg %p198
        %s296 = sand.u32 %s188, 1
        %s297 = scalar_lea.sflag [#allocation4], %s296
        %s298 = sand.u32 %s188, 1
        %s299 = smul.addr %s298, 8
        %s300 = scalar_lea.vmem [#allocation3], %s299
        %p301 = scmp.lt.s32.totalorder %s24, 1
        %s302 = scalar_select %p301, %s24, 1
        %p303 = scmp.lt.s32.totalorder %s25, 0
        %s304 = scalar_select %p303, %s25, 0
        %s305 = sadd.s32 %s304, %s302
        %s306 = smul.addr %s305, 2
        %s307 = scalar_lea.vmem %s0, %s306
        %s308 = ssub.s32 %s25, 1
        %p309 = scmp.gt.s32.totalorder %s308, 0
        %s310 = scalar_select %p309, %s308, 0
        %p311 = scmp.lt.s32.totalorder %s24, 1
        %s312 = scalar_select %p311, %s24, 1
        %p313 = scmp.lt.s32.totalorder %s310, 0
        %s314 = scalar_select %p313, %s310, 0
        %s315 = sadd.s32 %s314, %s312
        %s316 = smul.addr %s315, 2
        %s317 = scalar_lea.vmem %s1, %s316
        %s318 = ssub.s32 %s25, 1
        %p319 = scmp.gt.s32.totalorder %s318, 0
        %s320 = scalar_select %p319, %s318, 0
        %v322 = vld [vmem:[%s307] sm:$0x3]
        %p323 = scmp.eq.s32.totalorder %s25, 0
        // Predicated region
        $region45: #{tpu_custom_call.1} parent=43 // pred_check
          %p324 = pneg %p323
        $region46: #{tpu_custom_call.1} parent=43 // pred_check_branch
          %326 = sbr.rel (%p324) target = $region48
        $region47: #{tpu_custom_call.1} parent=43 // pred_region
          %327 = vst [vmem:[#allocation2] sm:$0x3] 0
        $region48: #{tpu_custom_call.1} parent=43 // pred_fallthru
          _
        %p328 = scmp.gt.s32.totalorder %s25, 0
        // Predicated region
        $region49: #{tpu_custom_call.1} parent=43 // pred_check
          %p329 = pneg %p328
        $region50: #{tpu_custom_call.1} parent=43 // pred_check_branch
          %331 = sbr.rel (%p329) target = $region52
        $region51: #{tpu_custom_call.1} parent=43 // pred_region
          %v332 = vld [vmem:[%s317] sm:$0x3]
          %333 = vst [vmem:[#allocation2] sm:$0x3] %v332
        $region52: #{tpu_custom_call.1} parent=43 // pred_fallthru
          _
        %334 = vst [vmem:[#allocation2 + $0x2] sm:$0x3] %v322
        %v335 = vld [vmem:[#allocation2] sm:$0xf]
        %v336 = vld [vmem:[%s2] sm:$0xf]
        %s337 = scalar_lea.vmem %s2, 4
        %v338 = vld [vmem:[%s337] sm:$0xf]
        %v341 = vunpack.c.l.s4 1983009808
        %v342 = vunpack.c.0.s8 %v341
        %v343 = vlaneseq
        %v344 = vshrl.u32 %v343, 7
        %v345 = vsub.s32 %v342, %v344
        %v346 = vrot.slane %v335, %v345
        %v347 = vcombine.high %v346, %v346
        %348 = vrot.lane.b32.xlu0 %v346, 2
        %v349 = vpop.permute.xlu0 %348
        %350 = vrot.lane.b32.xlu0 %v347, 2
        %v351 = vpop.permute.xlu0 %350
        %vm352 = vcmask 15360
        %v353 = vsel %vm352, %v349, %v351
        %vm354 = vcmask 31744
        %v356 = vsel %vm354, %v338, 0
        %vm358 = vcmask 1041408
        %v360 = vsel %vm358, %v353, 0
        %362 = vmatprep.subr.bf16.mxu0 0
        %363 = vmatpush1.bf16.msra.mxu0 %v360
        %364 = vmatprep.subr.bf16.mxu0 0
        %365 = vmatpush1.bf16.msra.mxu0 0
        %366 = vmatprep.subr.bf16.mxu0 0
        %367 = vmatpush1.bf16.msra.mxu0 0
        %368 = vmatprep.subr.bf16.mxu0 0
        %369 = vmatpush1.bf16.msra.mxu0 0
        %370 = vmatprep.subr.bf16.mxu0 0
        %371 = vmatpush1.bf16.msra.mxu0 0
        %372 = vmatprep.subr.bf16.mxu0 0
        %373 = vmatpush1.bf16.msra.mxu0 0
        %374 = vmatprep.subr.bf16.mxu0 0
        %375 = vmatpush1.bf16.msra.mxu0 0
        %376 = vmatprep.subr.bf16.mxu0 0
        %377 = vmatpush1.bf16.msra.mxu0 0
        %378 = vmatprep.subr.bf16.mxu0 0
        %379 = vmatpush1.bf16.msra.mxu0 0
        %380 = vmatprep.subr.bf16.mxu0 0
        %381 = vmatpush1.bf16.msra.mxu0 0
        %382 = vmatprep.subr.bf16.mxu0 0
        %383 = vmatpush1.bf16.msra.mxu0 0
        %384 = vmatprep.subr.bf16.mxu0 0
        %385 = vmatpush1.bf16.msra.mxu0 0
        %386 = vmatprep.subr.bf16.mxu0 0
        %387 = vmatpush1.bf16.msra.mxu0 0
        %388 = vmatprep.subr.bf16.mxu0 0
        %389 = vmatpush1.bf16.msra.mxu0 0
        %390 = vmatprep.subr.bf16.mxu0 0
        %391 = vmatpush1.bf16.msra.mxu0 0
        %392 = vmatprep.subr.bf16.mxu0 0
        %393 = vmatpush1.bf16.msra.mxu0 0
        %394 = vmatprep.mubr.bf16.mxu0 0
        %395 = vmatmul.mubr.bf16.gmra.mrb[0].mxu0 %v356
        %v396 = vpop.f32.mrb[0].mxu0
        %v397 = vadd.f32 0.0, %v396
        %v398 = vpop.f32.mrb[0].mxu0
        %v399 = vpop.f32.mrb[0].mxu0
        %v400 = vpop.f32.mrb[0].mxu0
        %401 = vdwg.mxu0
        %402 = vrot.lane.b32.xlu0 %v346, 4
        %v403 = vpop.permute.xlu0 %402
        %404 = vrot.lane.b32.xlu0 %v347, 4
        %v405 = vpop.permute.xlu0 %404
        %vm406 = vcmask 31744
        %v407 = vsel %vm406, %v403, %v405
        %v409 = vsel %vm354, %v336, 0
        %v412 = vsel %vm358, %v407, 0
        %414 = vmatprep.subr.bf16.mxu0 0
        %415 = vmatpush1.bf16.msra.mxu0 %v412
        %416 = vmatprep.subr.bf16.mxu0 0
        %417 = vmatpush1.bf16.msra.mxu0 0
        %418 = vmatprep.subr.bf16.mxu0 0
        %419 = vmatpush1.bf16.msra.mxu0 0
        %420 = vmatprep.subr.bf16.mxu0 0
        %421 = vmatpush1.bf16.msra.mxu0 0
        %422 = vmatprep.subr.bf16.mxu0 0
        %423 = vmatpush1.bf16.msra.mxu0 0
        %424 = vmatprep.subr.bf16.mxu0 0
        %425 = vmatpush1.bf16.msra.mxu0 0
        %426 = vmatprep.subr.bf16.mxu0 0
        %427 = vmatpush1.bf16.msra.mxu0 0
        %428 = vmatprep.subr.bf16.mxu0 0
        %429 = vmatpush1.bf16.msra.mxu0 0
        %430 = vmatprep.subr.bf16.mxu0 0
        %431 = vmatpush1.bf16.msra.mxu0 0
        %432 = vmatprep.subr.bf16.mxu0 0
        %433 = vmatpush1.bf16.msra.mxu0 0
        %434 = vmatprep.subr.bf16.mxu0 0
        %435 = vmatpush1.bf16.msra.mxu0 0
        %436 = vmatprep.subr.bf16.mxu0 0
        %437 = vmatpush1.bf16.msra.mxu0 0
        %438 = vmatprep.subr.bf16.mxu0 0
        %439 = vmatpush1.bf16.msra.mxu0 0
        %440 = vmatprep.subr.bf16.mxu0 0
        %441 = vmatpush1.bf16.msra.mxu0 0
        %442 = vmatprep.subr.bf16.mxu0 0
        %443 = vmatpush1.bf16.msra.mxu0 0
        %444 = vmatprep.subr.bf16.mxu0 0
        %445 = vmatpush1.bf16.msra.mxu0 0
        %446 = vmatprep.mubr.bf16.mxu0 0
        %447 = vmatmul.mubr.bf16.gmra.mrb[0].mxu0 %v409
        %v448 = vpop.f32.mrb[0].mxu0
        %v449 = vadd.f32 %v397, %v448
        %v450 = vpop.f32.mrb[0].mxu0
        %v451 = vpop.f32.mrb[0].mxu0
        %v452 = vpop.f32.mrb[0].mxu0
        %453 = vdwg.mxu0
        %v454 = vld [vmem:[#allocation2 + $0x2] sm:$0x3]
        %s455 = scalar_lea.vmem %s2, 8
        %v456 = vld [vmem:[%s455] sm:$0xf]
        %v458 = vsel %vm354, %v456, 0
        %v461 = vsel %vm358, %v454, 0
        %463 = vmatprep.subr.bf16.mxu0 0
        %464 = vmatpush1.bf16.msra.mxu0 %v461
        %465 = vmatprep.subr.bf16.mxu0 0
        %466 = vmatpush1.bf16.msra.mxu0 0
        %467 = vmatprep.subr.bf16.mxu0 0
        %468 = vmatpush1.bf16.msra.mxu0 0
        %469 = vmatprep.subr.bf16.mxu0 0
        %470 = vmatpush1.bf16.msra.mxu0 0
        %471 = vmatprep.subr.bf16.mxu0 0
        %472 = vmatpush1.bf16.msra.mxu0 0
        %473 = vmatprep.subr.bf16.mxu0 0
        %474 = vmatpush1.bf16.msra.mxu0 0
        %475 = vmatprep.subr.bf16.mxu0 0
        %476 = vmatpush1.bf16.msra.mxu0 0
        %477 = vmatprep.subr.bf16.mxu0 0
        %478 = vmatpush1.bf16.msra.mxu0 0
        %479 = vmatprep.subr.bf16.mxu0 0
        %480 = vmatpush1.bf16.msra.mxu0 0
        %481 = vmatprep.subr.bf16.mxu0 0
        %482 = vmatpush1.bf16.msra.mxu0 0
        %483 = vmatprep.subr.bf16.mxu0 0
        %484 = vmatpush1.bf16.msra.mxu0 0
        %485 = vmatprep.subr.bf16.mxu0 0
        %486 = vmatpush1.bf16.msra.mxu0 0
        %487 = vmatprep.subr.bf16.mxu0 0
        %488 = vmatpush1.bf16.msra.mxu0 0
        %489 = vmatprep.subr.bf16.mxu0 0
        %490 = vmatpush1.bf16.msra.mxu0 0
        %491 = vmatprep.subr.bf16.mxu0 0
        %492 = vmatpush1.bf16.msra.mxu0 0
        %493 = vmatprep.subr.bf16.mxu0 0
        %494 = vmatpush1.bf16.msra.mxu0 0
        %495 = vmatprep.mubr.bf16.mxu0 0
        %496 = vmatmul.mubr.bf16.gmra.mrb[0].mxu0 %v458
        %v497 = vpop.f32.mrb[0].mxu0
        %v498 = vadd.f32 0.0, %v497
        %v499 = vpop.f32.mrb[0].mxu0
        %v500 = vpop.f32.mrb[0].mxu0
        %v501 = vpop.f32.mrb[0].mxu0
        %502 = vdwg.mxu0
        %v503 = vadd.f32 %v449, %v498
        %v504 = vld [vmem:[%s3] sm:$0xff]
        %506 = vset.pattern.permute.xlu0 0
        %507 = vperm.xlu0 %506, %v504
        %v508 = vpop.permute.xlu0 %507
        %v510 = vadd.f32 %v503, %v508
        %v511 = vmax.f32 %v510, 0.0
        %v512 = vld [vmem:[%s4] sm:$0xf]
        %v513 = vld [vmem:[%s5] sm:$0xff]
        %515 = vset.pattern.permute.xlu0 0
        %516 = vperm.xlu0 %515, %v513
        %v517 = vpop.permute.xlu0 %516
        %v520 = vsel %vm354, %v512, 0
        %v523 = vsel %vm358, %v322, 0
        %525 = vmatprep.subr.bf16.mxu0 0
        %526 = vmatpush1.bf16.msra.mxu0 %v523
        %527 = vmatprep.subr.bf16.mxu0 0
        %528 = vmatpush1.bf16.msra.mxu0 0
        %529 = vmatprep.subr.bf16.mxu0 0
        %530 = vmatpush1.bf16.msra.mxu0 0
        %531 = vmatprep.subr.bf16.mxu0 0
        %532 = vmatpush1.bf16.msra.mxu0 0
        %533 = vmatprep.subr.bf16.mxu0 0
        %534 = vmatpush1.bf16.msra.mxu0 0
        %535 = vmatprep.subr.bf16.mxu0 0
        %536 = vmatpush1.bf16.msra.mxu0 0
        %537 = vmatprep.subr.bf16.mxu0 0
        %538 = vmatpush1.bf16.msra.mxu0 0
        %539 = vmatprep.subr.bf16.mxu0 0
        %540 = vmatpush1.bf16.msra.mxu0 0
        %541 = vmatprep.subr.bf16.mxu0 0
        %542 = vmatpush1.bf16.msra.mxu0 0
        %543 = vmatprep.subr.bf16.mxu0 0
        %544 = vmatpush1.bf16.msra.mxu0 0
        %545 = vmatprep.subr.bf16.mxu0 0
        %546 = vmatpush1.bf16.msra.mxu0 0
        %547 = vmatprep.subr.bf16.mxu0 0
        %548 = vmatpush1.bf16.msra.mxu0 0
        %549 = vmatprep.subr.bf16.mxu0 0
        %550 = vmatpush1.bf16.msra.mxu0 0
        %551 = vmatprep.subr.bf16.mxu0 0
        %552 = vmatpush1.bf16.msra.mxu0 0
        %553 = vmatprep.subr.bf16.mxu0 0
        %554 = vmatpush1.bf16.msra.mxu0 0
        %555 = vmatprep.subr.bf16.mxu0 0
        %556 = vmatpush1.bf16.msra.mxu0 0
        %557 = vmatprep.mubr.bf16.mxu0 0
        %558 = vmatmul.mubr.bf16.gmra.mrb[0].mxu0 %v520
        %v559 = vpop.f32.mrb[0].mxu0
        %v560 = vadd.f32 %v517, %v559
        %v561 = vpop.f32.mrb[0].mxu0
        %v562 = vpop.f32.mrb[0].mxu0
        %v563 = vpop.f32.mrb[0].mxu0
        %564 = vdwg.mxu0
        %v565 = vadd.f32 %v511, %v560
        %v566 = vmax.f32 %v565, 0.0
        %567 = vst [vmem:[%s300] sm:$0xff] %v566
        %s568 = sand.u32 %s188, 1
        %s569 = scalar_lea.sflag [#allocation4], %s568
        %s570 = sand.u32 %s188, 1
        %s571 = smul.addr %s570, 8
        %s572 = scalar_lea.vmem [#allocation3], %s571
        // Predicated region
        $region53: #{tpu_custom_call.1} parent=43 // pred_check
          %p573 = pneg %p198
        $region54: #{tpu_custom_call.1} parent=43 // pred_check_branch
          %575 = sbr.rel (%p573) target = $region56
        $region55: #{tpu_custom_call.1} parent=43 // pred_region
          %s577 = ssub.s32 128, 128
          %578 = vsyncadd %s569, %s577
          %s579 = sadd.s32 %s25, %s24
          %s580 = smul.addr %s579, 128
          %s581 = scalar_lea.hbm %s6, %s580
          %s583 = sshll.u32 %s572, 4
          %s584 = int_to_ptr.vmem [resolvable:$true] %s583
          %586 = dma.vmem_to_hbm [thread:$0]  %s584, 128, %s581, %s569
        $region56: #{tpu_custom_call.1} parent=43 // pred_fallthru
          _
      $region44: #{tpu_custom_call.1} parent=5 // pred_fallthru
        _
      %p587 = scmp.le.s32.totalorder 2, %s15
      // Predicated region
      $region57: #{tpu_custom_call.1} parent=5 // pred_check
        %p588 = pneg %p587
      $region58: #{tpu_custom_call.1} parent=5 // pred_check_branch
        %590 = sbr.rel (%p588) target = $region60
      $region59: #{tpu_custom_call.1} parent=5 // pred_region
        %s591 = ssub.s32 %s15, 2
        // Predicated region
        $region61: #{tpu_custom_call.1} parent=59 // pred_check
          %p592 = pneg %p204
        $region62: #{tpu_custom_call.1} parent=59 // pred_check_branch
          %594 = sbr.rel (%p592) target = $region64
        $region63: #{tpu_custom_call.1} parent=59 // pred_region
          %s595 = sand.u32 %s189, 1
          %s596 = scalar_lea.sflag [#allocation4], %s595
          %s597 = sand.u32 %s189, 1
          %s598 = smul.addr %s597, 8
          %s599 = scalar_lea.vmem [#allocation3], %s598
          %600 = dma.done %s596, 128
        $region64: #{tpu_custom_call.1} parent=59 // pred_fallthru
          _
      $region60: #{tpu_custom_call.1} parent=5 // pred_fallthru
        _
    $region6: #{tpu_custom_call.1} parent=1 // loop_footer
      %s19 = sadd.s32 1, %s15
    $region7: #{tpu_custom_call.1} parent=1 // loop_footer_branch
      %14 = sbr.rel target = $region3
    $region8: #{tpu_custom_call.1} parent=1 // loop_exit
      _
    %601 = vsyncpa [#allocation4], 1
    %s602 = scalar_lea.sflag [#allocation4], 1
    %603 = vsyncpa %s602, 1

</llo_original>
